<compile_context>
chip_gen: v7x
topology: tpu7x:2x2x1
jax: 0.10.0
libtpu: 0.0.40
codegen_flags: <defaults>
</compile_context>

<pallas_src>
import functools
import math

import jax
import jax.numpy as jnp
from jax import lax
from jax.experimental import pallas as pl
from jax.experimental.pallas import tpu as pltpu

ALPHA = 0.25
GAMMA = 2.0          # applied as an explicit single multiply in the kernel
LANES = 128


def _round_up(x, m):
    return ((x + m - 1) // m) * m


def _lcm(a, b):
    return a * b // math.gcd(a, b)


# ----------------------------------------------------------------------------
# Pallas kernel: per-block partial sums of focal cls loss / smooth-L1 loc loss
# All inputs are lane-folded row-major (., 128) slabs; output is one lane-dense
# (8, 384) partial-sum block per grid step (cls | loc | npos).
# ----------------------------------------------------------------------------
def focal_loss_kernel(pred_cls_ref, true_cls_ref, pred_loc_ref, true_loc_ref,
                      loc_mask_ref, out_ref, *, fc, fl, ragged_c, ragged_l):
    i = pl.program_id(0)

    # ---- focal classification loss (lane-folded (rc, 128) layout) ----
    p = pred_cls_ref[...]                           # f32 probabilities in (0,1)
    t = true_cls_ref[...].astype(jnp.float32)       # targets in {-1, 0, 1} (bf16 exact)
    rc = p.shape[0]

    is_one = t == 1.0
    a_t = jnp.where(is_one, ALPHA, 1.0 - ALPHA)
    p_t = jnp.where(is_one, p, 1.0 - p)
    # nn.BCELoss clamps log terms at -100; for t in {0,1} the blended two-log
    # BCE reduces exactly to -max(log(p_t), -100); ignore rows (t == -1) are
    # zeroed by the mask, so a single log suffices.
    bce = -jnp.maximum(jnp.log(p_t), -100.0)
    one_minus_pt = 1.0 - p_t                        # gamma=2 -> one explicit vmul
    keep_c = t >= 0.0                               # ignore rows: t == -1 everywhere
    if ragged_c:                                    # static flag: ragged last block
        rows = lax.broadcasted_iota(jnp.int32, (rc, 1), 0) + i * rc
        keep_c = jnp.logical_and(keep_c, rows < fc)
    # where (select), not multiply: OOB tail of a ragged block is undefined.
    cls_loss = jnp.where(keep_c, a_t * (one_minus_pt * one_minus_pt) * bce, 0.0)
    # Fold the tile to one (8,128) partial-sum vreg with pure elementwise adds
    # (no cross-lane reduce in the hot loop); final reduce happens in JAX.
    out_ref[:, 0:LANES] = jnp.sum(cls_loss.reshape(rc // 8, 8, LANES), axis=0)

    # ---- smooth-L1 localization loss (lane-folded (rl, 128) layout) ----
    # TODO(synk): external SmoothL1Loss beta unknown; standard beta=1.0 used.
    d = pred_loc_ref[...] - true_loc_ref[...]
    ad = jnp.abs(d)
    sl1 = jnp.where(ad < 1.0, 0.5 * d * d, ad - 0.5)
    m = loc_mask_ref[...].astype(jnp.float32)       # {0,1} on positive priors (bf16 exact)
    rl = d.shape[0]
    if ragged_l:                                    # static flag: ragged last block
        rows = lax.broadcasted_iota(jnp.int32, (rl, 1), 0) + i * rl
        valid = rows < fl
        m = jnp.where(valid, m, 0.0)
        sl1 = jnp.where(valid, sl1, 0.0)            # guard against NaN in OOB tail
    loc_loss = sl1 * m

    out_ref[:, LANES:2 * LANES] = jnp.sum(loc_loss.reshape(rl // 8, 8, LANES), axis=0)
    out_ref[:, 2 * LANES:3 * LANES] = jnp.sum(m.reshape(rl // 8, 8, LANES), axis=0)


@functools.partial(jax.jit, static_argnames=("tile_rows",))
def focal_loss_pallas(pred_cls, true_cls, pred_loc, true_locs, depth, *, tile_rows=65536):
    """pred_cls (N,P,C), true_cls (N,P,C), pred_loc (N,P,4), true_locs (N,P,4), depth (N,P)."""
    N, P, C = pred_cls.shape
    R = N * P

    # row_q: rows needed for exact (.,128) lane-folds of both streams.
    # blk_q: rows-per-block quantum so every non-full block satisfies the
    #        (8 sublanes f32 / 16 sublanes bf16, 128 lanes) tiling rules and
    #        the in-kernel 8-sublane fold.
    row_q = _lcm(128 // math.gcd(128, C), 32)
    blk_q = _lcm(2048 // math.gcd(2048, C), 512)

    Rq = _round_up(R, row_q)

    # Reshapes below are row-major/contiguous (no copy); the bf16 casts of the
    # targets / mask are the only materializations and they shrink the streams.
    pc = pred_cls.reshape(R, C).astype(jnp.float32)
    tc = true_cls.reshape(R, C).astype(jnp.bfloat16)          # {-1,0,1} exact
    plo = pred_loc.reshape(R, 4).astype(jnp.float32)
    tlo = true_locs.reshape(R, 4).astype(jnp.float32)
    lm = jnp.broadcast_to((depth.reshape(R, 1) > 0).astype(jnp.bfloat16), (R, 4))

    if Rq != R:
        # TODO(synk): non-lane-aligned prior counts force one padded copy per
        # stream here; align N*P to `row_q` upstream to keep this path cold.
        def pad_rows(x, fill):
            return jnp.concatenate(
                [x, jnp.full((Rq - R,) + x.shape[1:], fill, x.dtype)], axis=0)
        pc = pad_rows(pc, 0.5)      # finite log, masked out by t = -1
        tc = pad_rows(tc, -1.0)
        plo = pad_rows(plo, 0.0)
        tlo = pad_rows(tlo, 0.0)
        lm = pad_rows(lm, 0.0)

    # Lane-dense row-major folds: last dim = 128, full-width vld/vst.
    fc = Rq * C // LANES            # folded cls rows (total)
    fl = Rq * 4 // LANES            # folded loc rows (total)
    pc_f = pc.reshape(fc, LANES)
    tc_f = tc.reshape(fc, LANES)
    plo_f = plo.reshape(fl, LANES)
    tlo_f = tlo.reshape(fl, LANES)
    lm_f = lm.reshape(fl, LANES)

    # Rows per grid step: big enough to amortize ~0.35us/step overhead, capped
    # so (a) the grid splits >= 2 ways when possible (v7x megacore) and
    # (b) double-buffered blocks stay inside the 32 MiB scoped-VMEM request
    # (safe on v5e/v6e/v7x).
    half_cap = _round_up(-(-Rq // 2), blk_q)
    tr = max(blk_q, min(_round_up(tile_rows, blk_q), _round_up(Rq, blk_q), half_cap))

    if tr >= Rq and fc % 8 == 0 and fl % 8 == 0:
        rc, rl = fc, fl             # single full-array block: no OOB, no masking
    else:
        rc, rl = tr * C // LANES, tr * 4 // LANES

    G = -(-fc // rc)
    assert G == -(-fl // rl)

    kernel = functools.partial(
        focal_loss_kernel, fc=fc, fl=fl,
        ragged_c=(fc % rc != 0), ragged_l=(fl % rl != 0))

    out_bytes = G * 8 * 3 * LANES * 4
    cost = pl.CostEstimate(
        flops=12 * Rq * C + 10 * Rq * 4,
        transcendentals=Rq * C,                       # one log per cls element
        bytes_accessed=(pc_f.nbytes + tc_f.nbytes + plo_f.nbytes
                        + tlo_f.nbytes + lm_f.nbytes + out_bytes))

    parts = pl.pallas_call(
        kernel,
        out_shape=jax.ShapeDtypeStruct((G * 8, 3 * LANES), jnp.float32),
        grid=(G,),
        in_specs=[
            pl.BlockSpec((rc, LANES), lambda i: (i, 0)),
            pl.BlockSpec((rc, LANES), lambda i: (i, 0)),
            pl.BlockSpec((rl, LANES), lambda i: (i, 0)),
            pl.BlockSpec((rl, LANES), lambda i: (i, 0)),
            pl.BlockSpec((rl, LANES), lambda i: (i, 0)),
        ],
        out_specs=pl.BlockSpec((8, 3 * LANES), lambda i: (i, 0)),
        compiler_params=pltpu.CompilerParams(
            dimension_semantics=("parallel",),
            vmem_limit_bytes=32 * 1024 * 1024),
        cost_estimate=cost,
    )(pc_f, tc_f, plo_f, tlo_f, lm_f)

    # Tiny final reductions in plain JAX (G*8*384 elements total).
    num_of_pos = jnp.maximum(jnp.sum(parts[:, 2 * LANES:]) / 4.0, 1.0)
    cls_loss = jnp.sum(parts[:, :LANES]) / num_of_pos
    loc_loss = jnp.sum(parts[:, LANES:2 * LANES]) / num_of_pos
    total_loss = cls_loss + loc_loss
    return total_loss, (loc_loss, cls_loss)


# ----------------------------------------------------------------------------
# Plain-JAX glue: synthetic coder, anchors, and per-image target assignment
# ----------------------------------------------------------------------------
def cxcy_to_xy(cxcy):
    return jnp.concatenate([cxcy[:, :2] - cxcy[:, 2:] / 2.0,
                            cxcy[:, :2] + cxcy[:, 2:] / 2.0], axis=1)


def xy_to_cxcy(xy):
    return jnp.concatenate([(xy[:, :2] + xy[:, 2:]) / 2.0,
                            xy[:, 2:] - xy[:, :2]], axis=1)


def find_jaccard_overlap(set1, set2):
    lo = jnp.maximum(set1[:, None, :2], set2[None, :, :2])
    hi = jnp.minimum(set1[:, None, 2:], set2[None, :, 2:])
    wh = jnp.clip(hi - lo, 0.0, None)
    inter = wh[..., 0] * wh[..., 1]
    area1 = (set1[:, 2] - set1[:, 0]) * (set1[:, 3] - set1[:, 1])
    area2 = (set2[:, 2] - set2[:, 0]) * (set2[:, 3] - set2[:, 1])
    union = area1[:, None] + area2[None, :] - inter
    return inter / union


def encode(cxcy, priors_cxcy):
    # TODO(synk): external coder.encode variances unknown; standard tx,ty,tw,th encoding.
    g_cxcy = (cxcy[:, :2] - priors_cxcy[:, :2]) / priors_cxcy[:, 2:]
    g_wh = jnp.log(cxcy[:, 2:] / priors_cxcy[:, 2:])
    return jnp.concatenate([g_cxcy, g_wh], axis=1)


def make_anchors(feat=16, size=0.25):
    ys, xs = jnp.meshgrid(
        (jnp.arange(feat, dtype=jnp.float32) + 0.5) / feat,
        (jnp.arange(feat, dtype=jnp.float32) + 0.5) / feat,
        indexing="ij")
    cxcy = jnp.stack([xs.reshape(-1), ys.reshape(-1),
                      jnp.full((feat * feat,), size),
                      jnp.full((feat * feat,), size)], axis=1)
    return cxcy  # (P, 4) center form


def assign_targets(priors_xy, priors_cxcy, boxes, labels, num_classes):
    """Per-image target assignment (same semantics as the torch loop body)."""
    P = priors_xy.shape[0]
    iou = find_jaccard_overlap(priors_xy, boxes)      # (P, M)
    iou_max = iou.max(axis=1)
    iou_argmax = iou.argmax(axis=1)

    negative = iou_max < 0.4
    positive = iou_max >= 0.5

    true_classes = -jnp.ones((P, num_classes), jnp.float32)
    true_classes = jnp.where(negative[:, None], 0.0, true_classes)
    true_classes = jnp.where(positive[:, None], 0.0, true_classes)
    argmax_labels = labels[iou_argmax]
    one_hot = jax.nn.one_hot(argmax_labels, num_classes, dtype=jnp.float32)
    true_classes = jnp.where(positive[:, None], one_hot, true_classes)

    depth = -jnp.ones((P,), jnp.float32)
    depth = jnp.where(negative, 0.0, depth)
    depth = jnp.where(positive, 1.0, depth)

    matched = boxes[iou_argmax]                       # (P, 4) xy
    true_locs = encode(xy_to_cxcy(matched), priors_cxcy)
    return true_classes, true_locs, depth


# ----------------------------------------------------------------------------
if __name__ == "__main__":
    key = jax.random.PRNGKey(0)
    k1, k2, k3, k4, k5 = jax.random.split(key, 5)

    num_classes = 8
    N = 2                       # batch
    feat = 16                   # anchor grid -> 256 priors
    priors_cxcy = make_anchors(feat=feat, size=0.25)
    priors_xy = cxcy_to_xy(priors_cxcy)
    P = priors_xy.shape[0]      # 256

    # predictions (pred_cls already passed through sigmoid, as BCELoss expects probs)
    pred_loc = jax.random.normal(k1, (N, P, 4), jnp.float32)
    pred_cls = jax.nn.sigmoid(jax.random.normal(k2, (N, P, num_classes), jnp.float32))

    # synthetic ground truth: 3 boxes per image, sized ~ anchor size so positives exist
    M = 3
    centers = 0.2 + 0.6 * jax.random.uniform(k3, (N, M, 2))
    sizes = 0.2 + 0.1 * jax.random.uniform(k4, (N, M, 2))
    b_boxes = jnp.concatenate([centers - sizes / 2.0, centers + sizes / 2.0], axis=-1)
    b_labels = jax.random.randint(k5, (N, M), 0, num_classes)

    # target assignment (glue, plain JAX, static batch loop like the torch code)
    tcs, tls, dps = [], [], []
    for i in range(N):
        tc, tl, dp = assign_targets(priors_xy, priors_cxcy,
                                    b_boxes[i], b_labels[i], num_classes)
        tcs.append(tc); tls.append(tl); dps.append(dp)
    true_classes = jnp.stack(tcs)     # (N, P, C)
    true_locs = jnp.stack(tls)        # (N, P, 4)
    depth = jnp.stack(dps)            # (N, P)

    total_loss, (loc_loss, cls_loss) = focal_loss_pallas(
        pred_cls, true_classes, pred_loc, true_locs, depth)
    jax.block_until_ready(total_loss)

    # lightweight pure-JAX reference check (two-log BCE, as in the torch module)
    a_t = jnp.where(true_classes == 1, ALPHA, 1 - ALPHA)
    p_t = jnp.where(true_classes == 1, pred_cls, 1 - pred_cls)
    bce = -(true_classes * jnp.maximum(jnp.log(pred_cls), -100.0)
            + (1 - true_classes) * jnp.maximum(jnp.log(1 - pred_cls), -100.0))
    cls_l = a_t * (1 - p_t) ** 2 * bce
    npos = jnp.maximum(jnp.sum(depth > 0).astype(jnp.float32), 1.0)
    cls_ref = jnp.sum(cls_l * (depth >= 0)[..., None]) / npos
    d = pred_loc - true_locs
    sl1 = jnp.where(jnp.abs(d) < 1.0, 0.5 * d * d, jnp.abs(d) - 0.5)
    loc_ref = jnp.sum(sl1 * (depth > 0)[..., None]) / npos
    assert jnp.allclose(cls_loss, cls_ref, rtol=1e-4, atol=1e-5)
    assert jnp.allclose(loc_loss, loc_ref, rtol=1e-4, atol=1e-5)
    assert jnp.allclose(total_loss, cls_ref + loc_ref, rtol=1e-4, atol=1e-5)

    print("KERNEL_OK")
</pallas_src>

<mosaic_0001>
module attributes {stable_mosaic.version = 11 : i64} {
  func.func @focal_loss_kernel(%arg0: i32, %arg1: memref<32x128xf32, #tpu.memory_space<vmem>>, %arg2: memref<32x128xbf16, #tpu.memory_space<vmem>>, %arg3: memref<16x128xf32, #tpu.memory_space<vmem>>, %arg4: memref<16x128xf32, #tpu.memory_space<vmem>>, %arg5: memref<16x128xbf16, #tpu.memory_space<vmem>>, %arg6: memref<8x384xf32, #tpu.memory_space<vmem>>) attributes {dimension_semantics = [#tpu.dimension_semantics<parallel>], iteration_bounds = array<i64: 1>, scalar_prefetch = 0 : i64, scratch_operands = 0 : i64, tpu.core_type = #tpu.core_type<tc>, window_params = [{transform_indices = @transform_0, window_bounds = array<i64: 32, 128>}, {transform_indices = @transform_1, window_bounds = array<i64: 32, 128>}, {transform_indices = @transform_2, window_bounds = array<i64: 16, 128>}, {transform_indices = @transform_3, window_bounds = array<i64: 16, 128>}, {transform_indices = @transform_4, window_bounds = array<i64: 16, 128>}, {transform_indices = @transform_5, window_bounds = array<i64: 8, 384>}]} {
    %c0 = arith.constant 0 : index
    %c0_0 = arith.constant 0 : index
    %0 = vector.load %arg1[%c0, %c0_0] : memref<32x128xf32, #tpu.memory_space<vmem>>, vector<32x128xf32>
    %c0_1 = arith.constant 0 : index
    %c0_2 = arith.constant 0 : index
    %1 = vector.load %arg2[%c0_1, %c0_2] : memref<32x128xbf16, #tpu.memory_space<vmem>>, vector<32x128xbf16>
    %2 = arith.extf %1 : vector<32x128xbf16> to vector<32x128xf32>
    %cst = arith.constant 1.000000e+00 : f32
    %3 = vector.broadcast %cst : f32 to vector<32x128xf32>
    %4 = arith.cmpf oeq, %2, %3 : vector<32x128xf32>
    %cst_3 = arith.constant 2.500000e-01 : f32
    %cst_4 = arith.constant 7.500000e-01 : f32
    %5 = vector.broadcast %cst_3 : f32 to vector<32x128xf32>
    %6 = vector.broadcast %cst_4 : f32 to vector<32x128xf32>
    %7 = arith.select %4, %5, %6 : vector<32x128xi1>, vector<32x128xf32>
    %cst_5 = arith.constant 1.000000e+00 : f32
    %8 = vector.broadcast %cst_5 : f32 to vector<32x128xf32>
    %9 = arith.subf %8, %0 : vector<32x128xf32>
    %10 = arith.select %4, %0, %9 : vector<32x128xi1>, vector<32x128xf32>
    %11 = math.log %10 : vector<32x128xf32>
    %cst_6 = arith.constant -1.000000e+02 : f32
    %12 = vector.broadcast %cst_6 : f32 to vector<32x128xf32>
    %13 = arith.maximumf %11, %12 : vector<32x128xf32>
    %cst_7 = arith.constant 0.000000e+00 : f32
    %14 = vector.broadcast %cst_7 : f32 to vector<32x128xf32>
    %15 = arith.subf %14, %13 : vector<32x128xf32>
    %cst_8 = arith.constant 1.000000e+00 : f32
    %16 = vector.broadcast %cst_8 : f32 to vector<32x128xf32>
    %17 = arith.subf %16, %10 : vector<32x128xf32>
    %cst_9 = arith.constant 0.000000e+00 : f32
    %18 = vector.broadcast %cst_9 : f32 to vector<32x128xf32>
    %19 = arith.cmpf oge, %2, %18 : vector<32x128xf32>
    %20 = arith.mulf %17, %17 : vector<32x128xf32>
    %21 = arith.mulf %7, %20 : vector<32x128xf32>
    %22 = arith.mulf %21, %15 : vector<32x128xf32>
    %cst_10 = arith.constant 0.000000e+00 : f32
    %23 = vector.broadcast %cst_10 : f32 to vector<32x128xf32>
    %24 = arith.select %19, %22, %23 : vector<32x128xi1>, vector<32x128xf32>
    %25 = vector.shape_cast %24 : vector<32x128xf32> to vector<4x8x128xf32>
    %cst_11 = arith.constant dense<0.000000e+00> : vector<8x128xf32>
    %26 = vector.multi_reduction <add>, %25, %cst_11 [0] : vector<4x8x128xf32> to vector<8x128xf32>
    %c0_12 = arith.constant 0 : index
    %c0_13 = arith.constant 0 : index
    %27 = vector.load %arg6[%c0_12, %c0_13] : memref<8x384xf32, #tpu.memory_space<vmem>>, vector<8x128xf32>
    tpu.vector_store %arg6[%c0_12, %c0_13], %26 {strides = array<i32>} : memref<8x384xf32, #tpu.memory_space<vmem>>, vector<8x128xf32>,
    %c0_14 = arith.constant 0 : index
    %c0_15 = arith.constant 0 : index
    %28 = vector.load %arg3[%c0_14, %c0_15] : memref<16x128xf32, #tpu.memory_space<vmem>>, vector<16x128xf32>
    %c0_16 = arith.constant 0 : index
    %c0_17 = arith.constant 0 : index
    %29 = vector.load %arg4[%c0_16, %c0_17] : memref<16x128xf32, #tpu.memory_space<vmem>>, vector<16x128xf32>
    %30 = arith.subf %28, %29 : vector<16x128xf32>
    %31 = math.absf %30 : vector<16x128xf32>
    %cst_18 = arith.constant 1.000000e+00 : f32
    %32 = vector.broadcast %cst_18 : f32 to vector<16x128xf32>
    %33 = arith.cmpf olt, %31, %32 : vector<16x128xf32>
    %cst_19 = arith.constant 5.000000e-01 : f32
    %34 = vector.broadcast %cst_19 : f32 to vector<16x128xf32>
    %35 = arith.mulf %34, %30 : vector<16x128xf32>
    %36 = arith.mulf %35, %30 : vector<16x128xf32>
    %cst_20 = arith.constant 5.000000e-01 : f32
    %37 = vector.broadcast %cst_20 : f32 to vector<16x128xf32>
    %38 = arith.subf %31, %37 : vector<16x128xf32>
    %39 = arith.select %33, %36, %38 : vector<16x128xi1>, vector<16x128xf32>
    %c0_21 = arith.constant 0 : index
    %c0_22 = arith.constant 0 : index
    %40 = vector.load %arg5[%c0_21, %c0_22] : memref<16x128xbf16, #tpu.memory_space<vmem>>, vector<16x128xbf16>
    %41 = arith.extf %40 : vector<16x128xbf16> to vector<16x128xf32>
    %42 = arith.mulf %39, %41 : vector<16x128xf32>
    %43 = vector.shape_cast %42 : vector<16x128xf32> to vector<2x8x128xf32>
    %cst_23 = arith.constant dense<0.000000e+00> : vector<8x128xf32>
    %44 = vector.multi_reduction <add>, %43, %cst_23 [0] : vector<2x8x128xf32> to vector<8x128xf32>
    %c0_24 = arith.constant 0 : index
    %c128 = arith.constant 128 : index
    %45 = vector.load %arg6[%c0_24, %c128] : memref<8x384xf32, #tpu.memory_space<vmem>>, vector<8x128xf32>
    tpu.vector_store %arg6[%c0_24, %c128], %44 {strides = array<i32>} : memref<8x384xf32, #tpu.memory_space<vmem>>, vector<8x128xf32>,
    %46 = vector.shape_cast %41 : vector<16x128xf32> to vector<2x8x128xf32>
    %cst_25 = arith.constant dense<0.000000e+00> : vector<8x128xf32>
    %47 = vector.multi_reduction <add>, %46, %cst_25 [0] : vector<2x8x128xf32> to vector<8x128xf32>
    %c0_26 = arith.constant 0 : index
    %c256 = arith.constant 256 : index
    %48 = vector.load %arg6[%c0_26, %c256] : memref<8x384xf32, #tpu.memory_space<vmem>>, vector<8x128xf32>
    tpu.vector_store %arg6[%c0_26, %c256], %47 {strides = array<i32>} : memref<8x384xf32, #tpu.memory_space<vmem>>, vector<8x128xf32>,
    return
  }
  func.func @transform_0(%arg0: i32) -> (i32, i32) {
    %c0_i32 = arith.constant 0 : i32
    %c0_i32_0 = arith.constant 0 : i32
    return %arg0, %c0_i32 : i32, i32
  }
  func.func @transform_1(%arg0: i32) -> (i32, i32) {
    %c0_i32 = arith.constant 0 : i32
    %c0_i32_0 = arith.constant 0 : i32
    return %arg0, %c0_i32 : i32, i32
  }
  func.func @transform_2(%arg0: i32) -> (i32, i32) {
    %c0_i32 = arith.constant 0 : i32
    %c0_i32_0 = arith.constant 0 : i32
    return %arg0, %c0_i32 : i32, i32
  }
  func.func @transform_3(%arg0: i32) -> (i32, i32) {
    %c0_i32 = arith.constant 0 : i32
    %c0_i32_0 = arith.constant 0 : i32
    return %arg0, %c0_i32 : i32, i32
  }
  func.func @transform_4(%arg0: i32) -> (i32, i32) {
    %c0_i32 = arith.constant 0 : i32
    %c0_i32_0 = arith.constant 0 : i32
    return %arg0, %c0_i32 : i32, i32
  }
  func.func @transform_5(%arg0: i32) -> (i32, i32) {
    %c0_i32 = arith.constant 0 : i32
    %c0_i32_0 = arith.constant 0 : i32
    return %arg0, %c0_i32 : i32, i32
  }
}

</mosaic_0001>

<llo_original>
// kernel: focal_loss_pallas.1
$region0: #{focal_loss_pallas.1}
  #allocation0 [shape = 'u32[]', space=smem, size = 0x4, offset = 0x4, fixed_abs, tag = 'smem constant byte address 0x4 - core index']
  #allocation1 [shape = 'u32[144,128]{1,0:T(1,128)}', space=vmem, size = 0x12000, scoped, tag = 'internal scratch']
  %s0 = inlined_call_operand.vmem [shape: f32[32,128], index: 0, kind: input, shape index: {}]
  %s1 = inlined_call_operand.vmem [shape: bf16[32,128], index: 1, kind: input, shape index: {}]
  %s2 = inlined_call_operand.vmem [shape: f32[16,128], index: 2, kind: input, shape index: {}]
  %s3 = inlined_call_operand.vmem [shape: f32[16,128], index: 3, kind: input, shape index: {}]
  %s4 = inlined_call_operand.vmem [shape: bf16[16,128], index: 4, kind: input, shape index: {}]
  %s5 = inlined_call_operand.vmem [shape: f32[8,384], index: 5, kind: output, shape index: {}]
  %s6 = sld [smem:[#allocation0]]
  $region30: #{focal_loss_pallas.1} parent=0
    _
  %s8 = ssub.s32 1, %s6
  %s9 = scalar_select 0, %s8, %s6
  // Predicated region
  $region2: #{focal_loss_pallas.1} parent=0 // pred_check
    _
  $region3: #{focal_loss_pallas.1} parent=0 // pred_check_branch
    %11 = sbr.rel (0) target = $region5
  $region4: #{focal_loss_pallas.1} parent=0 // pred_region
    _
  $region5: #{focal_loss_pallas.1} parent=0 // pred_fallthru
    _
  // Predicated region
  $region6: #{focal_loss_pallas.1} parent=0 // pred_check
    _
  $region7: #{focal_loss_pallas.1} parent=0 // pred_check_branch
    %13 = sbr.rel (0) target = $region9
  $region8: #{focal_loss_pallas.1} parent=0 // pred_region
    _
  $region9: #{focal_loss_pallas.1} parent=0 // pred_fallthru
    _
  // Predicated region
  $region10: #{focal_loss_pallas.1} parent=0 // pred_check
    _
  $region11: #{focal_loss_pallas.1} parent=0 // pred_check_branch
    %15 = sbr.rel (0) target = $region13
  $region12: #{focal_loss_pallas.1} parent=0 // pred_region
    _
  $region13: #{focal_loss_pallas.1} parent=0 // pred_fallthru
    _
  // Predicated region
  $region14: #{focal_loss_pallas.1} parent=0 // pred_check
    _
  $region15: #{focal_loss_pallas.1} parent=0 // pred_check_branch
    %17 = sbr.rel (0) target = $region17
  $region16: #{focal_loss_pallas.1} parent=0 // pred_region
    _
  $region17: #{focal_loss_pallas.1} parent=0 // pred_fallthru
    _
  // Predicated region
  $region18: #{focal_loss_pallas.1} parent=0 // pred_check
    _
  $region19: #{focal_loss_pallas.1} parent=0 // pred_check_branch
    %19 = sbr.rel (0) target = $region21
  $region20: #{focal_loss_pallas.1} parent=0 // pred_region
    _
  $region21: #{focal_loss_pallas.1} parent=0 // pred_fallthru
    _
  %v20 = vld [vmem:[%s0] sm:$0xff]
  %v21 = vld [vmem:[%s0 + $0x8] sm:$0xff]
  %v22 = vld [vmem:[%s0 + $0x10] sm:$0xff]
  %v23 = vld [vmem:[%s0 + $0x18] sm:$0xff]
  %v24 = vld [vmem:[%s1] sm:$0xf]
  %v25 = vld [vmem:[%s1 + $0x4] sm:$0xf]
  %v26 = vld [vmem:[%s1 + $0x8] sm:$0xf]
  %v27 = vld [vmem:[%s1 + $0xc] sm:$0xf]
  %v28 = vunpack.c.l.bf16 %v24
  %v29 = vunpack.c.l.bf16 %v25
  %v30 = vunpack.c.l.bf16 %v26
  %v31 = vunpack.c.l.bf16 %v27
  %vm32 = vcmp.eq.f32.partialorder %v28, 1.0
  %vm33 = vcmp.eq.f32.partialorder %v29, 1.0
  %vm34 = vcmp.eq.f32.partialorder %v30, 1.0
  %vm35 = vcmp.eq.f32.partialorder %v31, 1.0
  %v36 = vsel %vm32, 0.25, 0.75
  %v37 = vsel %vm33, 0.25, 0.75
  %v38 = vsel %vm34, 0.25, 0.75
  %v39 = vsel %vm35, 0.25, 0.75
  %v40 = vsub.f32 1.0, %v20
  %v41 = vsub.f32 1.0, %v21
  %v42 = vsub.f32 1.0, %v22
  %v43 = vsub.f32 1.0, %v23
  %v44 = vsel %vm32, %v20, %v40
  %v45 = vsel %vm33, %v21, %v41
  %v46 = vsel %vm34, %v22, %v42
  %v47 = vsel %vm35, %v23, %v43
  %v48 = vlog2.pop %v44
  %v49 = vmul.f32 %v48, 0.6931472
  %v50 = vlog2.pop %v45
  %v51 = vmul.f32 %v50, 0.6931472
  %v52 = vlog2.pop %v46
  %v53 = vmul.f32 %v52, 0.6931472
  %v54 = vlog2.pop %v47
  %v55 = vmul.f32 %v54, 0.6931472
  %v56 = vmax.f32 %v49, -100.0
  %v57 = vmax.f32 %v51, -100.0
  %v58 = vmax.f32 %v53, -100.0
  %v59 = vmax.f32 %v55, -100.0
  %v60 = vsub.f32 0.0, %v56
  %v61 = vsub.f32 0.0, %v57
  %v62 = vsub.f32 0.0, %v58
  %v63 = vsub.f32 0.0, %v59
  %v64 = vsub.f32 1.0, %v44
  %v65 = vsub.f32 1.0, %v45
  %v66 = vsub.f32 1.0, %v46
  %v67 = vsub.f32 1.0, %v47
  %vm68 = vcmp.ge.f32.partialorder %v28, 0.0
  %vm69 = vcmp.ge.f32.partialorder %v29, 0.0
  %vm70 = vcmp.ge.f32.partialorder %v30, 0.0
  %vm71 = vcmp.ge.f32.partialorder %v31, 0.0
  %v72 = vmul.f32 %v64, %v64
  %v73 = vmul.f32 %v65, %v65
  %v74 = vmul.f32 %v66, %v66
  %v75 = vmul.f32 %v67, %v67
  %v76 = vmul.f32 %v36, %v72
  %v77 = vmul.f32 %v37, %v73
  %v78 = vmul.f32 %v38, %v74
  %v79 = vmul.f32 %v39, %v75
  %v80 = vmul.f32 %v76, %v60
  %v81 = vmul.f32 %v77, %v61
  %v82 = vmul.f32 %v78, %v62
  %v83 = vmul.f32 %v79, %v63
  %v84 = vsel %vm68, %v80, 0.0
  %v85 = vsel %vm69, %v81, 0.0
  %v86 = vsel %vm70, %v82, 0.0
  %v87 = vsel %vm71, %v83, 0.0
  %v88 = vadd.f32 %v84, %v85
  %v89 = vadd.f32 %v88, %v86
  %v90 = vadd.f32 %v89, %v87
  %91 = vst [vmem:[%s5] sm:$0xff] %v90
  %v92 = vld [vmem:[%s2] sm:$0xff]
  %v93 = vld [vmem:[%s2 + $0x8] sm:$0xff]
  %v94 = vld [vmem:[%s3] sm:$0xff]
  %v95 = vld [vmem:[%s3 + $0x8] sm:$0xff]
  %v96 = vsub.f32 %v92, %v94
  %v97 = vsub.f32 %v93, %v95
  %v98 = vand.u32 2147483647, %v96
  %v99 = vand.u32 2147483647, %v97
  %vm100 = vcmp.lt.f32.partialorder %v98, 1.0
  %vm101 = vcmp.lt.f32.partialorder %v99, 1.0
  %v102 = vmul.f32 %v96, 0.5
  %v103 = vmul.f32 %v97, 0.5
  %v104 = vmul.f32 %v102, %v96
  %v105 = vmul.f32 %v103, %v97
  %v106 = vsub.f32 %v98, 0.5
  %v107 = vsub.f32 %v99, 0.5
  %v108 = vsel %vm100, %v104, %v106
  %v109 = vsel %vm101, %v105, %v107
  %v110 = vld [vmem:[%s4] sm:$0xf]
  %v111 = vld [vmem:[%s4 + $0x4] sm:$0xf]
  %v112 = vunpack.c.l.bf16 %v110
  %v113 = vunpack.c.l.bf16 %v111
  %v114 = vmul.f32 %v108, %v112
  %v115 = vmul.f32 %v109, %v113
  %v116 = vadd.f32 %v114, %v115
  %117 = vst [vmem:[%s5 + $0x8] sm:$0xff] %v116
  %v118 = vadd.f32 %v112, %v113
  %119 = vst [vmem:[%s5 + $0x10] sm:$0xff] %v118
  // Predicated region
  $region22: #{focal_loss_pallas.1} parent=0 // pred_check
    _
  $region23: #{focal_loss_pallas.1} parent=0 // pred_check_branch
    %121 = sbr.rel (0) target = $region25
  $region24: #{focal_loss_pallas.1} parent=0 // pred_region
    _
  $region25: #{focal_loss_pallas.1} parent=0 // pred_fallthru
    _
  // Predicated region
  $region26: #{focal_loss_pallas.1} parent=0 // pred_check
    _
  $region27: #{focal_loss_pallas.1} parent=0 // pred_check_branch
    %123 = sbr.rel (0) target = $region29
  $region28: #{focal_loss_pallas.1} parent=0 // pred_region
    _
  $region29: #{focal_loss_pallas.1} parent=0 // pred_fallthru
    _

</llo_original>
